<compile_context>
chip_gen: v7x
topology: tpu7x:2x2x1
jax: 0.10.0
libtpu: 0.0.40
codegen_flags: <defaults>
</compile_context>

<pallas_src>
import functools

import jax
import jax.numpy as jnp
from jax import lax
from jax.experimental import pallas as pl
from jax.experimental.pallas import tpu as pltpu


def _round_up(x: int, m: int) -> int:
    return ((x + m - 1) // m) * m


_SINGLE_BLOCK_MAX_B = 256  # below this the whole problem is a few KiB; one block


def _choose_tm(B: int, block_b: int) -> int:
    """Batch tile size: lane-aligned (mult. of 128) and >=2 blocks for large B."""
    if B <= _SINGLE_BLOCK_MAX_B:
        return B  # single block; block dims equal full array dims
    block_b = max(128, _round_up(block_b, 128))
    # At least 2 grid blocks so both v7x TensorCores take work; multiple of 128
    # so the [L, tm] output block stores are unmasked, full-lane vst.
    tm = min(block_b, _round_up(pl.cdiv(B, 2), 128))
    return min(tm, B)


def _predictor_kernel(x_ref, w_ref, o_ref):
    # x_ref : [tm, F]  batch tile of high-level features (VMEM, f32 or bf16)
    # w_ref : [L,  F]  weight_w as stored by the module (VMEM-resident, no transpose)
    # o_ref : [L, tm]  sigmoid probabilities, lane-dense along the batch tile
    logits_t = lax.dot_general(
        w_ref[...],
        x_ref[...],
        dimension_numbers=(((1,), (1,)), ((), ())),  # contract F with F -> [L, tm]
        preferred_element_type=jnp.float32,          # f32 accumulate on the MXU
    )
    o_ref[...] = jax.nn.sigmoid(logits_t).astype(o_ref.dtype)


@functools.partial(jax.jit, static_argnames=("block_b", "input_dtype"))
def deep_multi_tag_predictor(
    high_feature: jax.Array,
    weight_w: jax.Array,
    *,
    block_b: int = 4096,
    input_dtype=None,
) -> jax.Array:
    """high_feature: [B, F], weight_w: [L, F] -> [B, L] probabilities in [0, 1].

    input_dtype=jnp.bfloat16 halves input HBM traffic for the large-B,
    bandwidth-bound regime; accumulation and sigmoid stay in f32.
    """
    B, F = high_feature.shape
    L, F2 = weight_w.shape
    assert F == F2, "feature dim mismatch"

    if input_dtype is not None:
        high_feature = high_feature.astype(input_dtype)
        weight_w = weight_w.astype(input_dtype)

    tm = _choose_tm(B, block_b)
    grid = (pl.cdiv(B, tm),)

    in_bytes = jnp.dtype(high_feature.dtype).itemsize
    cost = pl.CostEstimate(
        flops=2 * B * F * L,
        bytes_accessed=in_bytes * (B * F + L * F) + 4 * L * B,
        transcendentals=B * L,
    )

    # Kernel output is the lane-dense transposed layout [L, B]; each grid step
    # writes a full-width (L, tm) block with tm on the lane axis.
    probs_lb = pl.pallas_call(
        _predictor_kernel,
        out_shape=jax.ShapeDtypeStruct((L, B), jnp.float32),
        grid_spec=pl.GridSpec(
            grid=grid,
            in_specs=[
                pl.BlockSpec((tm, F), lambda i: (i, 0)),  # batch tile of x
                pl.BlockSpec((L, F), lambda i: (0, 0)),   # weight resident across steps
            ],
            out_specs=pl.BlockSpec((L, tm), lambda i: (0, i)),  # lane-dense blocks
        ),
        compiler_params=pltpu.CompilerParams(
            dimension_semantics=(pltpu.PARALLEL,),  # v7x: split batch across 2 TCs
        ),
        cost_estimate=cost,
    )(high_feature, weight_w)

    # Module semantics return [B, L]. This is a tiny [14, B] transpose under the
    # same jit; consumers that accept [L, B] should skip it and take probs_lb.
    return probs_lb.T


if __name__ == "__main__":
    key = jax.random.PRNGKey(0)
    k_x, k_w, k_big = jax.random.split(key, 3)

    batch_size = 8
    aesthetic_feature_dim = 32
    label_num = 14  # hard-coded to 14 in the module, same here

    # Deterministic "init.normal_(mean=0, std=1)" equivalent for the weight.
    weight_w = jax.random.normal(
        k_w, (label_num, aesthetic_feature_dim), dtype=jnp.float32
    )
    high_feature = jax.random.normal(
        k_x, (batch_size, aesthetic_feature_dim), dtype=jnp.float32
    )

    # Small-batch (single block, deployed shape) path.
    probs = jax.block_until_ready(deep_multi_tag_predictor(high_feature, weight_w))
    ref = jax.nn.sigmoid(high_feature @ weight_w.T)
    assert probs.shape == (batch_size, label_num)
    assert jnp.allclose(probs, ref, atol=1e-5, rtol=1e-5)

    # Larger-batch path: >=2 lane-dense (L, tm) blocks, weight VMEM-resident,
    # non-multiple B exercises the clipped last block.
    big_B = 1000
    big_x = jax.random.normal(k_big, (big_B, aesthetic_feature_dim), dtype=jnp.float32)
    big_probs = jax.block_until_ready(deep_multi_tag_predictor(big_x, weight_w))
    big_ref = jax.nn.sigmoid(big_x @ weight_w.T)
    assert big_probs.shape == (big_B, label_num)
    assert jnp.allclose(big_probs, big_ref, atol=1e-5, rtol=1e-5)

    # bf16-input path for the HBM-bound large-B regime (f32 accumulate + sigmoid).
    bf_probs = jax.block_until_ready(
        deep_multi_tag_predictor(big_x, weight_w, input_dtype=jnp.bfloat16)
    )
    bf_ref = jax.nn.sigmoid(
        big_x.astype(jnp.bfloat16).astype(jnp.float32)
        @ weight_w.astype(jnp.bfloat16).astype(jnp.float32).T
    )
    assert bf_probs.shape == (big_B, label_num)
    assert jnp.allclose(bf_probs, bf_ref, atol=2e-3)

    print("KERNEL_OK")
</pallas_src>

<mosaic_0001>
module attributes {stable_mosaic.version = 11 : i64} {
  func.func @_predictor_kernel(%arg0: i32, %arg1: memref<8x32xf32, #tpu.memory_space<vmem>>, %arg2: memref<14x32xf32, #tpu.memory_space<vmem>>, %arg3: memref<14x8xf32, #tpu.memory_space<vmem>>) attributes {dimension_semantics = [#tpu.dimension_semantics<parallel>], iteration_bounds = array<i64: 1>, scalar_prefetch = 0 : i64, scratch_operands = 0 : i64, tpu.core_type = #tpu.core_type<tc>, window_params = [{transform_indices = @transform_0, window_bounds = array<i64: 8, 32>}, {pipeline_mode = #tpu.pipeline_mode<synchronous>, transform_indices = @transform_1, window_bounds = array<i64: 14, 32>}, {transform_indices = @transform_2, window_bounds = array<i64: 14, 8>}]} {
    %c0 = arith.constant 0 : index
    %c0_0 = arith.constant 0 : index
    %0 = vector.load %arg2[%c0, %c0_0] : memref<14x32xf32, #tpu.memory_space<vmem>>, vector<14x32xf32>
    %c0_1 = arith.constant 0 : index
    %c0_2 = arith.constant 0 : index
    %1 = vector.load %arg1[%c0_1, %c0_2] : memref<8x32xf32, #tpu.memory_space<vmem>>, vector<8x32xf32>
    %cst = arith.constant dense<0.000000e+00> : vector<14x8xf32>
    %2 = tpu.matmul %0, %1, %cst {dimension_numbers = #tpu.dot_dimension_numbers<[1], [1], [0], [0], [0, 0, 1, 0], [], []>} : vector<14x32xf32>, vector<8x32xf32>, vector<14x8xf32> -> vector<14x8xf32>
    %3 = arith.negf %2 : vector<14x8xf32>
    %4 = math.exp %3 : vector<14x8xf32>
    %cst_3 = arith.constant 1.000000e+00 : f32
    %5 = vector.broadcast %cst_3 : f32 to vector<14x8xf32>
    %6 = arith.addf %5, %4 : vector<14x8xf32>
    %7 = arith.divf %5, %6 : vector<14x8xf32>
    %c0_4 = arith.constant 0 : index
    %c0_5 = arith.constant 0 : index
    %8 = vector.load %arg3[%c0_4, %c0_5] : memref<14x8xf32, #tpu.memory_space<vmem>>, vector<14x8xf32>
    tpu.vector_store %arg3[%c0_4, %c0_5], %7 {strides = array<i32>} : memref<14x8xf32, #tpu.memory_space<vmem>>, vector<14x8xf32>,
    return
  }
  func.func @transform_0(%arg0: i32) -> (i32, i32) {
    %c0_i32 = arith.constant 0 : i32
    %c0_i32_0 = arith.constant 0 : i32
    return %arg0, %c0_i32 : i32, i32
  }
  func.func @transform_1(%arg0: i32) -> (i32, i32) {
    %c0_i32 = arith.constant 0 : i32
    %c0_i32_0 = arith.constant 0 : i32
    %c0_i32_1 = arith.constant 0 : i32
    return %c0_i32, %c0_i32_0 : i32, i32
  }
  func.func @transform_2(%arg0: i32) -> (i32, i32) {
    %c0_i32 = arith.constant 0 : i32
    %c0_i32_0 = arith.constant 0 : i32
    return %c0_i32, %arg0 : i32, i32
  }
}

</mosaic_0001>

<llo_original>
// kernel: deep_multi_tag_predictor.1
$region0: #{deep_multi_tag_predictor.1}
  #allocation0 [shape = 'u32[]', space=smem, size = 0x4, offset = 0x4, fixed_abs, tag = 'smem constant byte address 0x4 - core index']
  #allocation1 [shape = 'u32[144,128]{1,0:T(1,128)}', space=vmem, size = 0x12000, scoped, tag = 'internal scratch']
  %s0 = inlined_call_operand.hbm [shape: f32[8,32], index: 0, kind: input, shape index: {}]
  %s1 = inlined_call_operand.hbm [shape: f32[14,32], index: 1, kind: input, shape index: {}]
  %s2 = inlined_call_operand.vmem [shape: f32[14,8], index: 2, kind: output, shape index: {}]
  %s3 = sld [smem:[#allocation0]]
  $region26: #{deep_multi_tag_predictor.1} parent=0
    _
  %s5 = ssub.s32 1, %s3
  %s6 = scalar_select 0, %s5, %s3
  $region1: #{deep_multi_tag_predictor.1} parent=0
    #allocation2 [shape = 'u8[4096]{0}', space=vmem, size = 0x1000, scoped, tag = 'input window, operand 0, single buffered']
    #allocation3 [shape = 's32[1]{0}', space=sflag, size = 0x4, scoped, tag = 'scoped memory for deep_multi_tag_predictor.1']
    #allocation4 [shape = 'u8[8192]{0}', space=vmem, size = 0x2000, scoped, tag = 'input window, operand 1, single buffered']
    #allocation5 [shape = 's32[1]{0}', space=sflag, size = 0x4, scoped, tag = 'scoped memory for deep_multi_tag_predictor.1']
    %7 = vsyncpa [#allocation3], 0
    %8 = vsyncpa [#allocation5], 0
    // Predicated region
    $region2: #{deep_multi_tag_predictor.1} parent=1 // pred_check
      _
    $region3: #{deep_multi_tag_predictor.1} parent=1 // pred_check_branch
      %10 = sbr.rel (0) target = $region5
    $region4: #{deep_multi_tag_predictor.1} parent=1 // pred_region
      %s12 = ssub.s32 128, 128
      %13 = vsyncadd [#allocation3], %s12
      %s15 = sshll.u32 [#allocation2], 4
      %s16 = int_to_ptr.vmem [resolvable:$true] %s15
      %18 = dma.hbm_to_vmem [thread:$0]  %s0, 128, %s16, [#allocation3]
    $region5: #{deep_multi_tag_predictor.1} parent=1 // pred_fallthru
      _
    // Predicated region
    $region6: #{deep_multi_tag_predictor.1} parent=1 // pred_check
      _
    $region7: #{deep_multi_tag_predictor.1} parent=1 // pred_check_branch
      %20 = sbr.rel (0) target = $region9
    $region8: #{deep_multi_tag_predictor.1} parent=1 // pred_region
      %s22 = ssub.s32 256, 256
      %23 = vsyncadd [#allocation5], %s22
      %s24 = sshll.u32 [#allocation4], 4
      %s25 = int_to_ptr.vmem [resolvable:$true] %s24
      %30 = dma.hbm_to_vmem [thread:$0]  %s1, 256, %s25, [#allocation5], 128, 128, 8
    $region9: #{deep_multi_tag_predictor.1} parent=1 // pred_fallthru
      _
    // Predicated region
    $region10: #{deep_multi_tag_predictor.1} parent=1 // pred_check
      _
    $region11: #{deep_multi_tag_predictor.1} parent=1 // pred_check_branch
      %32 = sbr.rel (0) target = $region13
    $region12: #{deep_multi_tag_predictor.1} parent=1 // pred_region
      %33 = dma.done [#allocation3], 128
    $region13: #{deep_multi_tag_predictor.1} parent=1 // pred_fallthru
      _
    // Predicated region
    $region14: #{deep_multi_tag_predictor.1} parent=1 // pred_check
      _
    $region15: #{deep_multi_tag_predictor.1} parent=1 // pred_check_branch
      %35 = sbr.rel (0) target = $region17
    $region16: #{deep_multi_tag_predictor.1} parent=1 // pred_region
      %36 = dma.done [#allocation5], 256
    $region17: #{deep_multi_tag_predictor.1} parent=1 // pred_fallthru
      _
    %v37 = vld [vmem:[#allocation4] sm:$0xff]
    %v38 = vld [vmem:[#allocation4 + $0x8] sm:$0x3f]
    %v39 = vld [vmem:[#allocation2] sm:$0xff]
    %vm40 = vcmask 261120
    %v42 = vsel %vm40, %v37, 0
    %v45 = vsel %vm40, %v38, 0
    %v48 = vsel %vm40, %v39, 0
    %50 = vmatprep.subr.mxu0 0.0
    %51 = vmatpush1.xpose.msra.mxu0 %v48
    %52 = vmatprep.subr.mxu0 0.0
    %53 = vmatpush1.xpose.msra.mxu0 0.0
    %54 = vmatprep.subr.mxu0 0.0
    %55 = vmatpush1.xpose.msra.mxu0 0.0
    %56 = vmatprep.subr.mxu0 0.0
    %57 = vmatpush1.xpose.msra.mxu0 0.0
    %58 = vmatprep.subr.mxu0 0.0
    %59 = vmatpush1.xpose.msra.mxu0 0.0
    %60 = vmatprep.subr.mxu0 0.0
    %61 = vmatpush1.xpose.msra.mxu0 0.0
    %62 = vmatprep.subr.mxu0 0.0
    %63 = vmatpush1.xpose.msra.mxu0 0.0
    %64 = vmatprep.subr.mxu0 0.0
    %65 = vmatpush1.xpose.msra.mxu0 0.0
    %66 = vmatprep.subr.mxu0 0.0
    %67 = vmatpush1.xpose.msra.mxu0 0.0
    %68 = vmatprep.subr.mxu0 0.0
    %69 = vmatpush1.xpose.msra.mxu0 0.0
    %70 = vmatprep.subr.mxu0 0.0
    %71 = vmatpush1.xpose.msra.mxu0 0.0
    %72 = vmatprep.subr.mxu0 0.0
    %73 = vmatpush1.xpose.msra.mxu0 0.0
    %74 = vmatprep.subr.mxu0 0.0
    %75 = vmatpush1.xpose.msra.mxu0 0.0
    %76 = vmatprep.subr.mxu0 0.0
    %77 = vmatpush1.xpose.msra.mxu0 0.0
    %78 = vmatprep.subr.mxu0 0.0
    %79 = vmatpush1.xpose.msra.mxu0 0.0
    %80 = vmatprep.subr.mxu0 0.0
    %81 = vmatpush1.xpose.msra.mxu0 0.0
    %82 = vmatprep.subr.mxu0 0.0
    %83 = vmatpush1.xpose.msra.mxu0 0.0
    %84 = vmatprep.subr.mxu0 0.0
    %85 = vmatpush1.xpose.msra.mxu0 0.0
    %86 = vmatprep.subr.mxu0 0.0
    %87 = vmatpush1.xpose.msra.mxu0 0.0
    %88 = vmatprep.subr.mxu0 0.0
    %89 = vmatpush1.xpose.msra.mxu0 0.0
    %90 = vmatprep.subr.mxu0 0.0
    %91 = vmatpush1.xpose.msra.mxu0 0.0
    %92 = vmatprep.subr.mxu0 0.0
    %93 = vmatpush1.xpose.msra.mxu0 0.0
    %94 = vmatprep.subr.mxu0 0.0
    %95 = vmatpush1.xpose.msra.mxu0 0.0
    %96 = vmatprep.subr.mxu0 0.0
    %97 = vmatpush1.xpose.msra.mxu0 0.0
    %98 = vmatprep.subr.mxu0 0.0
    %99 = vmatpush1.xpose.msra.mxu0 0.0
    %100 = vmatprep.subr.mxu0 0.0
    %101 = vmatpush1.xpose.msra.mxu0 0.0
    %102 = vmatprep.subr.mxu0 0.0
    %103 = vmatpush1.xpose.msra.mxu0 0.0
    %104 = vmatprep.subr.mxu0 0.0
    %105 = vmatpush1.xpose.msra.mxu0 0.0
    %106 = vmatprep.subr.mxu0 0.0
    %107 = vmatpush1.xpose.msra.mxu0 0.0
    %108 = vmatprep.subr.mxu0 0.0
    %109 = vmatpush1.xpose.msra.mxu0 0.0
    %110 = vmatprep.subr.mxu0 0.0
    %111 = vmatpush1.xpose.msra.mxu0 0.0
    %112 = vmatprep.subr.mxu0 0.0
    %113 = vmatpush1.xpose.msra.mxu0 0.0
    %114 = vmatprep.mubr.f32.mxu0 0.0
    %115 = vmatmul.mubr.f32.gmra.mrb[0].mxu0 %v42
    %v116 = vpop.f32.mrb[0].mxu0
    %v117 = vadd.f32 0.0, %v116
    %v118 = vpop.f32.mrb[0].mxu0
    %119 = vmatprep.mubr.f32.mxu0 0.0
    %120 = vmatmul.mubr.f32.gmra.mrb[0].mxu0 %v45
    %v121 = vpop.f32.mrb[0].mxu0
    %v122 = vadd.f32 0.0, %v121
    %v123 = vpop.f32.mrb[0].mxu0
    %124 = vdwg.mxu0
    %v125 = vxor.u32 %v117, 2147483648
    %v126 = vxor.u32 %v122, 2147483648
    %v127 = vmul.f32 %v125, 1.442695
    %v128 = vpow.pop %v127
    %v129 = vmul.f32 %v126, 1.442695
    %v130 = vpow.pop %v129
    %v131 = vadd.f32 %v128, 1.0
    %v132 = vadd.f32 %v130, 1.0
    %v133 = vrcp.pop %v131
    %v134 = vmul.f32 1.0, %v133
    %v135 = vrcp.pop %v132
    %v136 = vmul.f32 1.0, %v135
    %vm137 = vcmask 64512
    %138 = vst.msk [vmem:[%s2] sm:$0xff] %vm137, %v134
    %vm139 = vcmask 62464
    %140 = vst.msk [vmem:[%s2 + $0x8] sm:$0x3f] %vm139, %v136
    // Predicated region
    $region18: #{deep_multi_tag_predictor.1} parent=1 // pred_check
      _
    $region19: #{deep_multi_tag_predictor.1} parent=1 // pred_check_branch
      %142 = sbr.rel (0) target = $region21
    $region20: #{deep_multi_tag_predictor.1} parent=1 // pred_region
      _
    $region21: #{deep_multi_tag_predictor.1} parent=1 // pred_fallthru
      _
    // Predicated region
    $region22: #{deep_multi_tag_predictor.1} parent=1 // pred_check
      _
    $region23: #{deep_multi_tag_predictor.1} parent=1 // pred_check_branch
      %144 = sbr.rel (0) target = $region25
    $region24: #{deep_multi_tag_predictor.1} parent=1 // pred_region
      _
    $region25: #{deep_multi_tag_predictor.1} parent=1 // pred_fallthru
      _
    %145 = vsyncpa [#allocation3], 1
    %146 = vsyncpa [#allocation5], 1

</llo_original>
